<compile_context>
chip_gen: v5e
topology: v5e:2x2
jax: 0.10.0
libtpu: 0.0.40
codegen_flags: <defaults>
</compile_context>

<pallas_src>
import jax
import jax.numpy as jnp
from jax import lax
from jax.experimental import pallas as pl
from jax.experimental.pallas import tpu as pltpu

EPS = 1e-8  # torch.nn.functional.cosine_similarity default eps
# NOTE: implements the documented torch formula x1.x2 / max(||x1||*||x2||, eps);
# current ATen clamps each norm separately, which only differs when a norm is
# below 1e-8 (negligible for real inputs).


def detector_kernel(wb_ref, x1_ref, x2_ref, out_ref):
    """Cosine similarity over the feature (lane) axis + Linear(1, 2).

    wb_ref  : (4,) f32 in SMEM  -- [w0, w1, b0, b1] of Linear(1, 2)
    x1_ref  : (TILE_B, D) in VMEM (input dtype)
    x2_ref  : (TILE_B, D) in VMEM (input dtype)
    out_ref : (TILE_B, 2) in VMEM (input dtype)
    """
    # Cast per-tile (VPU convert is free under DMA slack on this mem-bound kernel).
    x1 = x1_ref[...].astype(jnp.float32)
    x2 = x2_ref[...].astype(jnp.float32)

    # Row-wise reductions along the feature (lane) axis, dim=1.
    dot = jnp.sum(x1 * x2, axis=1, keepdims=True)   # (TILE_B, 1)
    s1 = jnp.sum(x1 * x1, axis=1, keepdims=True)    # ||x1||^2
    s2 = jnp.sum(x2 * x2, axis=1, keepdims=True)    # ||x2||^2

    # cos = dot / max(sqrt(s1*s2), eps) == dot * rsqrt(max(s1*s2, eps^2))
    cos = dot * lax.rsqrt(jnp.maximum(s1 * s2, EPS * EPS))  # (TILE_B, 1)

    # Linear(1, 2): two affine columns from SMEM scalars (no iota/where filler).
    w0 = wb_ref[0]
    w1 = wb_ref[1]
    b0 = wb_ref[2]
    b1 = wb_ref[3]
    out_ref[:, 0:1] = (cos * w0 + b0).astype(out_ref.dtype)
    out_ref[:, 1:2] = (cos * w1 + b1).astype(out_ref.dtype)


def _vmem_capacity_bytes():
    """Best-effort per-core VMEM capacity; conservative fallback (v7x = 64 MiB)."""
    try:
        info = pltpu.get_tpu_info()
        cap = getattr(info, "vmem_capacity_bytes", None)
        if cap:
            return int(cap)
    except Exception:
        pass
    return 64 * 1024 * 1024


def _choose_tiling(B, D, itemsize):
    """Pick batch tile + vmem limit per chip generation.

    Resident pipeline footprint ~= 2 inputs x 2 buffers x tile_bytes, so the
    per-input-tile budget is ~1/4 of the resident budget.
    """
    vmem_cap = _vmem_capacity_bytes()
    if vmem_cap >= 100 * 1024 * 1024:
        # v5e / v6e: 128 MiB physical VMEM -> ~48 MiB resident double-buffered tiles.
        tile_budget = 12 * 1024 * 1024
        vmem_limit = 64 * 1024 * 1024
    else:
        # v7x: 64 MiB VMEM per TensorCore -> stay under ~40 MiB scoped.
        tile_budget = 8 * 1024 * 1024
        vmem_limit = 40 * 1024 * 1024

    rows = tile_budget // (D * itemsize)
    rows = max(rows, 8)
    rows = (rows // 8) * 8                      # (8, 128) sublane constraint

    if B < 8:
        tile_b = B                              # block == full batch dim is legal
    else:
        b_cap = ((B + 7) // 8) * 8              # never bigger than one padded batch
        tile_b = min(rows, b_cap)
    return tile_b, vmem_limit


def detector_forward(x1, x2, weight, bias):
    """x1, x2: (B, D); weight: (2, 1); bias: (2,) -> (B, 2) in x1.dtype."""
    B, D = x1.shape
    itemsize = jnp.dtype(x1.dtype).itemsize
    tile_b, vmem_limit = _choose_tiling(B, D, itemsize)

    # [w0, w1, b0, b1] as SMEM scalars (read once, no per-step VMEM DMA).
    wb = jnp.concatenate(
        [weight.reshape(-1).astype(jnp.float32), bias.reshape(-1).astype(jnp.float32)]
    )  # (4,)

    grid = (pl.cdiv(B, tile_b),)                 # partial last block masked by Pallas
    out = pl.pallas_call(
        detector_kernel,
        out_shape=jax.ShapeDtypeStruct((B, 2), x1.dtype),
        grid=grid,
        in_specs=[
            pl.BlockSpec(memory_space=pltpu.MemorySpace.SMEM),      # wb (4,)
            pl.BlockSpec((tile_b, D), lambda i: (i, 0)),            # x1 tile
            pl.BlockSpec((tile_b, D), lambda i: (i, 0)),            # x2 tile
        ],
        out_specs=pl.BlockSpec((tile_b, 2), lambda i: (i, 0)),
        compiler_params=pltpu.CompilerParams(
            dimension_semantics=("parallel",),   # batch axis independent across steps
            vmem_limit_bytes=vmem_limit,
        ),
    )(wb, x1, x2)

    return out


def detector_reference(x1, x2, weight, bias):
    x1 = x1.astype(jnp.float32)
    x2 = x2.astype(jnp.float32)
    dot = jnp.sum(x1 * x2, axis=1, keepdims=True)
    n1 = jnp.sqrt(jnp.sum(x1 * x1, axis=1, keepdims=True))
    n2 = jnp.sqrt(jnp.sum(x2 * x2, axis=1, keepdims=True))
    cos = dot / jnp.maximum(n1 * n2, EPS)
    return cos @ weight.astype(jnp.float32).T + bias.astype(jnp.float32)[None, :]


if __name__ == "__main__":
    # Small shapes consistent with the forward: x1, x2 of shape (B, D).
    B, D = 8, 128
    key = jax.random.PRNGKey(0)
    k1, k2, kw, kb = jax.random.split(key, 4)

    x1 = jax.random.normal(k1, (B, D), dtype=jnp.float32)
    x2 = jax.random.normal(k2, (B, D), dtype=jnp.float32)

    # Deterministic init matching torch.nn.Linear(1, 2): U(-1/sqrt(1), 1/sqrt(1))
    weight = jax.random.uniform(kw, (2, 1), minval=-1.0, maxval=1.0, dtype=jnp.float32)
    bias = jax.random.uniform(kb, (2,), minval=-1.0, maxval=1.0, dtype=jnp.float32)

    out = jax.block_until_ready(detector_forward(x1, x2, weight, bias))
    ref = detector_reference(x1, x2, weight, bias)
    assert out.shape == (B, 2)
    assert jnp.allclose(out, ref, atol=1e-5, rtol=1e-5), "mismatch vs reference"

    # Ragged batch (B not a multiple of 8) -> exercises the masked partial block
    # path that replaced the wrapper-side jnp.pad.
    B2 = 37
    x1b = jax.random.normal(k1, (B2, D), dtype=jnp.float32)
    x2b = jax.random.normal(k2, (B2, D), dtype=jnp.float32)
    out2 = jax.block_until_ready(detector_forward(x1b, x2b, weight, bias))
    ref2 = detector_reference(x1b, x2b, weight, bias)
    assert out2.shape == (B2, 2)
    assert jnp.allclose(out2, ref2, atol=1e-5, rtol=1e-5), "mismatch (ragged batch)"

    # bf16 inputs -> exercises the no-wrapper-upcast path (cast happens in-kernel).
    x1c = x1.astype(jnp.bfloat16)
    x2c = x2.astype(jnp.bfloat16)
    out3 = jax.block_until_ready(detector_forward(x1c, x2c, weight, bias))
    ref3 = detector_reference(x1c, x2c, weight, bias)
    assert out3.shape == (B, 2) and out3.dtype == jnp.bfloat16
    assert jnp.allclose(out3.astype(jnp.float32), ref3, atol=1e-2, rtol=1e-2), "mismatch (bf16)"

    print("KERNEL_OK")
</pallas_src>

<mosaic_0001>
module attributes {stable_mosaic.version = 11 : i64} {
  func.func @detector_kernel(%arg0: i32, %arg1: memref<4xf32, #tpu.memory_space<smem>>, %arg2: memref<8x128xf32, #tpu.memory_space<vmem>>, %arg3: memref<8x128xf32, #tpu.memory_space<vmem>>, %arg4: memref<8x2xf32, #tpu.memory_space<vmem>>) attributes {dimension_semantics = [#tpu.dimension_semantics<parallel>], iteration_bounds = array<i64: 1>, scalar_prefetch = 0 : i64, scratch_operands = 0 : i64, tpu.core_type = #tpu.core_type<tc>, window_params = [{transform_indices = @transform_0, window_bounds = array<i64: 4>}, {transform_indices = @transform_1, window_bounds = array<i64: 8, 128>}, {transform_indices = @transform_2, window_bounds = array<i64: 8, 128>}, {transform_indices = @transform_3, window_bounds = array<i64: 8, 2>}]} {
    %c0 = arith.constant 0 : index
    %c0_0 = arith.constant 0 : index
    %0 = vector.load %arg2[%c0, %c0_0] : memref<8x128xf32, #tpu.memory_space<vmem>>, vector<8x128xf32>
    %c0_1 = arith.constant 0 : index
    %c0_2 = arith.constant 0 : index
    %1 = vector.load %arg3[%c0_1, %c0_2] : memref<8x128xf32, #tpu.memory_space<vmem>>, vector<8x128xf32>
    %2 = arith.mulf %0, %1 : vector<8x128xf32>
    %cst = arith.constant dense<0.000000e+00> : vector<8xf32>
    %3 = vector.multi_reduction <add>, %2, %cst [1] : vector<8x128xf32> to vector<8xf32>
    %4 = vector.shape_cast %3 : vector<8xf32> to vector<8x1xf32>
    %5 = arith.mulf %0, %0 : vector<8x128xf32>
    %cst_3 = arith.constant dense<0.000000e+00> : vector<8xf32>
    %6 = vector.multi_reduction <add>, %5, %cst_3 [1] : vector<8x128xf32> to vector<8xf32>
    %7 = vector.shape_cast %6 : vector<8xf32> to vector<8x1xf32>
    %8 = arith.mulf %1, %1 : vector<8x128xf32>
    %cst_4 = arith.constant dense<0.000000e+00> : vector<8xf32>
    %9 = vector.multi_reduction <add>, %8, %cst_4 [1] : vector<8x128xf32> to vector<8xf32>
    %10 = vector.shape_cast %9 : vector<8xf32> to vector<8x1xf32>
    %11 = arith.mulf %7, %10 : vector<8x1xf32>
    %cst_5 = arith.constant 1.000000e-16 : f32
    %12 = vector.broadcast %cst_5 : f32 to vector<8x1xf32>
    %13 = arith.maximumf %11, %12 : vector<8x1xf32>
    %14 = math.rsqrt %13 : vector<8x1xf32>
    %15 = arith.mulf %4, %14 : vector<8x1xf32>
    %c0_6 = arith.constant 0 : index
    %16 = memref.load %arg1[%c0_6] : memref<4xf32, #tpu.memory_space<smem>>
    %c1 = arith.constant 1 : index
    %17 = memref.load %arg1[%c1] : memref<4xf32, #tpu.memory_space<smem>>
    %c2 = arith.constant 2 : index
    %18 = memref.load %arg1[%c2] : memref<4xf32, #tpu.memory_space<smem>>
    %c3 = arith.constant 3 : index
    %19 = memref.load %arg1[%c3] : memref<4xf32, #tpu.memory_space<smem>>
    %20 = vector.broadcast %16 : f32 to vector<8x1xf32>
    %21 = arith.mulf %15, %20 : vector<8x1xf32>
    %22 = vector.broadcast %18 : f32 to vector<8x1xf32>
    %23 = arith.addf %21, %22 : vector<8x1xf32>
    %c0_7 = arith.constant 0 : index
    %c0_8 = arith.constant 0 : index
    %24 = vector.load %arg4[%c0_7, %c0_8] : memref<8x2xf32, #tpu.memory_space<vmem>>, vector<8x1xf32>
    tpu.vector_store %arg4[%c0_7, %c0_8], %23 {strides = array<i32>} : memref<8x2xf32, #tpu.memory_space<vmem>>, vector<8x1xf32>,
    %25 = vector.broadcast %17 : f32 to vector<8x1xf32>
    %26 = arith.mulf %15, %25 : vector<8x1xf32>
    %27 = vector.broadcast %19 : f32 to vector<8x1xf32>
    %28 = arith.addf %26, %27 : vector<8x1xf32>
    %c0_9 = arith.constant 0 : index
    %c1_10 = arith.constant 1 : index
    %29 = vector.load %arg4[%c0_9, %c1_10] : memref<8x2xf32, #tpu.memory_space<vmem>>, vector<8x1xf32>
    tpu.vector_store %arg4[%c0_9, %c1_10], %28 {strides = array<i32>} : memref<8x2xf32, #tpu.memory_space<vmem>>, vector<8x1xf32>,
    return
  }
  func.func @transform_0(%arg0: i32) -> i32 {
    %c0_i32 = arith.constant 0 : i32
    %c0_i32_0 = arith.constant 0 : i32
    return %c0_i32 : i32
  }
  func.func @transform_1(%arg0: i32) -> (i32, i32) {
    %c0_i32 = arith.constant 0 : i32
    %c0_i32_0 = arith.constant 0 : i32
    return %arg0, %c0_i32 : i32, i32
  }
  func.func @transform_2(%arg0: i32) -> (i32, i32) {
    %c0_i32 = arith.constant 0 : i32
    %c0_i32_0 = arith.constant 0 : i32
    return %arg0, %c0_i32 : i32, i32
  }
  func.func @transform_3(%arg0: i32) -> (i32, i32) {
    %c0_i32 = arith.constant 0 : i32
    %c0_i32_0 = arith.constant 0 : i32
    return %arg0, %c0_i32 : i32, i32
  }
}

</mosaic_0001>

<llo_original>
// kernel: tpu_custom_call.1
$region0: #{tpu_custom_call.1}
  #allocation0 [shape = 'u32[]', space=smem, size = 0x4, offset = 0x4, fixed_abs, tag = 'smem constant byte address 0x4 - core index']
  #allocation1 [shape = 'u32[72,128]{1,0:T(1,128)}', space=vmem, size = 0x9000, scoped, tag = 'internal scratch']
  %s0 = inlined_call_operand.hbm [shape: f32[4], index: 0, kind: input, shape index: {}]
  %s1 = inlined_call_operand.hbm [shape: f32[8,128], index: 1, kind: input, shape index: {}]
  %s2 = inlined_call_operand.hbm [shape: f32[8,128], index: 2, kind: input, shape index: {}]
  %s3 = inlined_call_operand.vmem [shape: f32[8,2], index: 3, kind: output, shape index: {}]
  %s4 = sld [smem:[#allocation0]]
  $region34: #{tpu_custom_call.1} parent=0
    _
  %s6 = ssub.s32 1, %s4
  %s7 = scalar_select 0, %s6, %s4
  $region1: #{tpu_custom_call.1} parent=0
    #allocation2 [shape = 'u8[512]{0}', space=smem, size = 0x200, scoped, tag = 'input window, operand 0, single buffered']
    #allocation3 [shape = 's32[1]{0}', space=sflag, size = 0x4, scoped, tag = 'scoped memory for tpu_custom_call.1']
    #allocation4 [shape = 's32[1]{0}', space=sflag, size = 0x4, scoped, tag = 'scoped memory for tpu_custom_call.1']
    #allocation5 [shape = 'u8[4096]{0}', space=vmem, size = 0x1000, scoped, tag = 'input window, operand 1, single buffered']
    #allocation6 [shape = 'u8[4096]{0}', space=vmem, size = 0x1000, scoped, tag = 'input window, operand 2, single buffered']
    #allocation7 [shape = 's32[1]{0}', space=sflag, size = 0x4, scoped, tag = 'scoped memory for tpu_custom_call.1']
    %8 = vsyncpa [#allocation4], 0
    %9 = vsyncpa [#allocation3], 0
    %10 = vsyncpa [#allocation7], 0
    // Predicated region
    $region2: #{tpu_custom_call.1} parent=1 // pred_check
      _
    $region3: #{tpu_custom_call.1} parent=1 // pred_check_branch
      %12 = sbr.rel (0) target = $region5
    $region4: #{tpu_custom_call.1} parent=1 // pred_region
      %14 = vsyncadd [#allocation4], 0
      %s16 = sshll.u32 %s0, 4
      %s17 = int_to_ptr.hbm [resolvable:$true] %s16
      %19 = dma.hbm_to_smem %s17, 16, [#allocation2], [#allocation4]
    $region5: #{tpu_custom_call.1} parent=1 // pred_fallthru
      _
    // Predicated region
    $region6: #{tpu_custom_call.1} parent=1 // pred_check
      _
    $region7: #{tpu_custom_call.1} parent=1 // pred_check_branch
      %21 = sbr.rel (0) target = $region9
    $region8: #{tpu_custom_call.1} parent=1 // pred_region
      %23 = vsyncadd [#allocation3], 0
      %s25 = sshll.u32 %s1, 4
      %s26 = int_to_ptr.hbm [resolvable:$true] %s25
      %s27 = sshll.u32 [#allocation5], 4
      %s28 = int_to_ptr.vmem [resolvable:$true] %s27
      %30 = dma.hbm_to_vmem [thread:$0]  %s26, 128, %s28, [#allocation3]
    $region9: #{tpu_custom_call.1} parent=1 // pred_fallthru
      _
    // Predicated region
    $region10: #{tpu_custom_call.1} parent=1 // pred_check
      _
    $region11: #{tpu_custom_call.1} parent=1 // pred_check_branch
      %32 = sbr.rel (0) target = $region13
    $region12: #{tpu_custom_call.1} parent=1 // pred_region
      %34 = vsyncadd [#allocation7], 0
      %s36 = sshll.u32 %s2, 4
      %s37 = int_to_ptr.hbm [resolvable:$true] %s36
      %s38 = sshll.u32 [#allocation6], 4
      %s39 = int_to_ptr.vmem [resolvable:$true] %s38
      %41 = dma.hbm_to_vmem [thread:$0]  %s37, 128, %s39, [#allocation7]
    $region13: #{tpu_custom_call.1} parent=1 // pred_fallthru
      _
    // Predicated region
    $region14: #{tpu_custom_call.1} parent=1 // pred_check
      _
    $region15: #{tpu_custom_call.1} parent=1 // pred_check_branch
      %43 = sbr.rel (0) target = $region17
    $region16: #{tpu_custom_call.1} parent=1 // pred_region
      %45 = dma.done [#allocation4], 16
    $region17: #{tpu_custom_call.1} parent=1 // pred_fallthru
      _
    // Predicated region
    $region18: #{tpu_custom_call.1} parent=1 // pred_check
      _
    $region19: #{tpu_custom_call.1} parent=1 // pred_check_branch
      %47 = sbr.rel (0) target = $region21
    $region20: #{tpu_custom_call.1} parent=1 // pred_region
      %49 = dma.done [#allocation3], 128
    $region21: #{tpu_custom_call.1} parent=1 // pred_fallthru
      _
    // Predicated region
    $region22: #{tpu_custom_call.1} parent=1 // pred_check
      _
    $region23: #{tpu_custom_call.1} parent=1 // pred_check_branch
      %51 = sbr.rel (0) target = $region25
    $region24: #{tpu_custom_call.1} parent=1 // pred_region
      %53 = dma.done [#allocation7], 128
    $region25: #{tpu_custom_call.1} parent=1 // pred_fallthru
      _
    %54 = sfence
    %v55 = vld [vmem:[#allocation5] sm:$0xff]
    %v56 = vld [vmem:[#allocation6] sm:$0xff]
    %v57 = vmul.f32 %v55, %v56
    %58 = vadd.xlane.f32.xlu0 %v57
    %v59 = vpop.xlane.xlu0 %58
    %v60 = vmul.f32 %v55, %v55
    %61 = vadd.xlane.f32.xlu0 %v60
    %v62 = vpop.xlane.xlu0 %61
    %v63 = vmul.f32 %v56, %v56
    %64 = vadd.xlane.f32.xlu0 %v63
    %v65 = vpop.xlane.xlu0 %64
    %v66 = vmul.f32 %v62, %v65
    %v67 = vmax.f32 %v66, 1e-16
    %v68 = vrsqrt.pop %v67
    %v69 = vmul.f32 %v68, %v67
    %v70 = vmul.f32 %v69, %v68
    %v71 = vmul.f32 0.5, %v70
    %v72 = vsub.f32 1.5, %v71
    %v73 = vmul.f32 %v68, %v72
    %vm74 = vweird.f32 %v67
    %vm75 = vweird.f32 %v68
    %vm76 = vmor %vm74, %vm75
    %v77 = vsel %vm76, %v68, %v73
    %v78 = vmul.f32 %v59, %v77
    %s79 = sld [smem:[#allocation2]]
    %s80 = sld [smem:[#allocation2 + $0x1]]
    %s81 = sld [smem:[#allocation2 + $0x2]]
    %s82 = sld [smem:[#allocation2 + $0x3]]
    %v83 = vstv %s79
    %v84 = vmul.f32 %v78, %v83
    %v85 = vstv %s81
    %v86 = vadd.f32 %v84, %v85
    %vm87 = vcmask 7168
    %88 = vst.msk [vmem:[%s3] sm:$0xff] %vm87, %v86
    %v89 = vstv %s80
    %v90 = vmul.f32 %v78, %v89
    %v91 = vstv %s82
    %v92 = vadd.f32 %v90, %v91
    %vm93 = vcmask 15368
    %94 = vst.msk [vmem:[%s3] sm:$0xff] %vm93, %v92
    // Predicated region
    $region26: #{tpu_custom_call.1} parent=1 // pred_check
      _
    $region27: #{tpu_custom_call.1} parent=1 // pred_check_branch
      %96 = sbr.rel (0) target = $region29
    $region28: #{tpu_custom_call.1} parent=1 // pred_region
      _
    $region29: #{tpu_custom_call.1} parent=1 // pred_fallthru
      _
    // Predicated region
    $region30: #{tpu_custom_call.1} parent=1 // pred_check
      _
    $region31: #{tpu_custom_call.1} parent=1 // pred_check_branch
      %98 = sbr.rel (0) target = $region33
    $region32: #{tpu_custom_call.1} parent=1 // pred_region
      _
    $region33: #{tpu_custom_call.1} parent=1 // pred_fallthru
      _
    %99 = vsyncpa [#allocation3], 1
    %100 = vsyncpa [#allocation7], 1
    %101 = vsyncpa [#allocation4], 1

</llo_original>
